<compile_context>
chip_gen: v7x
topology: tpu7x:2x2x1
jax: 0.10.0
libtpu: 0.0.40
codegen_flags: <defaults>
</compile_context>

<pallas_src>
import functools

import jax
import jax.numpy as jnp
from jax import lax
from jax.experimental import pallas as pl
from jax.experimental.pallas import tpu as pltpu

EPS = 1e-8
LANES = 128                     # pad the feature dim to one full vreg lane width
MATMUL_DTYPE = jnp.bfloat16     # MXU operand dtype (accumulation stays f32)


def _layernorm(h, gamma, beta, lane_mask, d):
    """torch-style: mean(-1), std(-1) unbiased (ddof=1), g*(x-mean)/(std+eps)+b.

    Padded lanes of `h` are exactly zero, so the unmasked lane-sum divided by
    the TRUE d is the exact mean; centered values are masked before the
    variance sum (padded lanes would otherwise contribute (-mean)^2).
    """
    mean = jnp.sum(h, axis=-1, keepdims=True) * (1.0 / d)
    diff = (h - mean) * lane_mask
    var = jnp.sum(diff * diff, axis=-1, keepdims=True) * (1.0 / (d - 1))
    denom = jnp.sqrt(var) + EPS
    # EUP approximate reciprocal + one Newton-Raphson refinement -> ~f32
    # accuracy without a VPU divide.
    inv = pl.reciprocal(denom, approx=True)
    inv = inv * (2.0 - denom * inv)
    return gamma * diff * inv + beta


def _block_kernel(B, T, d,
                  x_ref,                        # (B*T, LANES) f32
                  wqkv_ref, bqkv_ref,           # (LANES, 3*LANES) bf16, (1, 3*LANES) f32
                  w1_ref, b1_ref,               # (LANES, LANES) bf16, (1, LANES) f32
                  w2_ref, b2_ref,
                  g1_ref, be1_ref,              # (T, LANES) f32
                  g2_ref, be2_ref,
                  o_ref):                       # (B*T, LANES) f32
    x2 = x_ref[...]                             # padded lanes are exactly 0

    lane = lax.broadcasted_iota(jnp.int32, (1, 1, LANES), 2)
    lane_mask = (lane < d).astype(jnp.float32)

    # --- MySelfAttention: fused QKV projection, single MXU pass (N = 3*128) ---
    qkv = jnp.dot(x2.astype(MATMUL_DTYPE), wqkv_ref[...],
                  preferred_element_type=jnp.float32) + bqkv_ref[...]
    # 128-aligned static slices: whole-vreg selections, no lane shuffles.
    q = qkv[:, 0 * LANES:1 * LANES].reshape(B, T, LANES)
    k = qkv[:, 1 * LANES:2 * LANES].reshape(B, T, LANES)
    v = qkv[:, 2 * LANES:3 * LANES].reshape(B, T, LANES)

    # scores = Q K^T / sqrt(d): contract LAST dims directly (no transpose);
    # padded lanes of q/k are zero so they add nothing to the contraction.
    scores = jnp.einsum("btd,bsd->bts",
                        q.astype(MATMUL_DTYPE), k.astype(MATMUL_DTYPE),
                        preferred_element_type=jnp.float32) * (1.0 / (d ** 0.5))
    scores = scores - jnp.max(scores, axis=-1, keepdims=True)
    p = jnp.exp(scores)
    p = p * pl.reciprocal(jnp.sum(p, axis=-1, keepdims=True), approx=True)
    attn = jnp.einsum("bts,bsd->btd",
                      p.astype(MATMUL_DTYPE), v.astype(MATMUL_DTYPE),
                      preferred_element_type=jnp.float32)        # (B, T, LANES)

    # --- residual + norm1 (dropout == identity, eval mode) ---
    h = _layernorm(attn + x2.reshape(B, T, LANES),
                   g1_ref[...], be1_ref[...], lane_mask, d)

    # --- FFN on flattened rows (B*T, LANES) for better MXU fill ---
    h2 = h.reshape(B * T, LANES)
    ff = jnp.dot(h2.astype(MATMUL_DTYPE), w1_ref[...],
                 preferred_element_type=jnp.float32) + b1_ref[...]
    ff = jnp.maximum(ff, 0.0)
    ff = jnp.dot(ff.astype(MATMUL_DTYPE), w2_ref[...],
                 preferred_element_type=jnp.float32) + b2_ref[...]

    # --- residual + norm2 ---
    out = _layernorm(ff.reshape(B, T, LANES) + h,
                     g2_ref[...], be2_ref[...], lane_mask, d)
    o_ref[...] = out.reshape(B * T, LANES).astype(o_ref.dtype)   # lane-dense store


def pad_and_fuse_params(params, d):
    """One-time preparation OUTSIDE the per-call path: fuse Q/K/V and zero-pad
    every feature dim to 128 lanes.  Bias / gamma / beta pads are zero so the
    padded lanes stay exactly zero through attention, layernorm and the FFN."""
    assert d <= LANES

    def pad_w(w):     # (d, d) -> (LANES, LANES), bf16 MXU operand
        return jnp.pad(w, ((0, LANES - d), (0, LANES - d))).astype(MATMUL_DTYPE)

    def pad_b(b):     # (1, d) -> (1, LANES)
        return jnp.pad(b, ((0, 0), (0, LANES - d)))

    def pad_td(g):    # (T, d) -> (T, LANES)
        return jnp.pad(g, ((0, 0), (0, LANES - d)))

    wqkv = jnp.concatenate([pad_w(params["wq"]), pad_w(params["wk"]),
                            pad_w(params["wv"])], axis=1)        # (LANES, 3*LANES)
    bqkv = jnp.concatenate([pad_b(params["bq"]), pad_b(params["bk"]),
                            pad_b(params["bv"])], axis=1)        # (1, 3*LANES)
    return dict(
        wqkv=wqkv, bqkv=bqkv,
        w1=pad_w(params["w1"]), b1=pad_b(params["b1"]),
        w2=pad_w(params["w2"]), b2=pad_b(params["b2"]),
        g1=pad_td(params["g1"]), be1=pad_td(params["be1"]),
        g2=pad_td(params["g2"]), be2=pad_td(params["be2"]),
    )


@jax.jit
def transformer_block(x, pp):
    """x: (B, T, d) float32.  pp: output of pad_and_fuse_params()."""
    B, T, d = x.shape
    x_pad = jnp.pad(x.reshape(B * T, d), ((0, 0), (0, LANES - d)))

    args = (x_pad, pp["wqkv"], pp["bqkv"],
            pp["w1"], pp["b1"], pp["w2"], pp["b2"],
            pp["g1"], pp["be1"], pp["g2"], pp["be2"])

    vmem = pl.BlockSpec(memory_space=pltpu.MemorySpace.VMEM)   # whole array in VMEM

    out = pl.pallas_call(
        functools.partial(_block_kernel, B, T, d),
        out_shape=jax.ShapeDtypeStruct((B * T, LANES), x.dtype),
        in_specs=[vmem] * len(args),
        out_specs=vmem,
        compiler_params=pltpu.CompilerParams(
            vmem_limit_bytes=32 * 1024 * 1024),   # safe on v5e/v6e/v7x (64 MiB VMEM)
    )(*args)
    return out[:, :d].reshape(B, T, d)


def init_params(key, T, d):
    ks = jax.random.split(key, 10)

    def lin(kw, kb):
        w = jax.random.normal(kw, (d, d), jnp.float32) * 0.1   # (d_in, d_out)
        b = jax.random.normal(kb, (1, d), jnp.float32) * 0.1
        return w, b

    wq, bq = lin(ks[0], ks[1])
    wk, bk = lin(ks[2], ks[3])
    wv, bv = lin(ks[4], ks[5])
    w1, b1 = lin(ks[6], ks[7])
    w2, b2 = lin(ks[8], ks[9])
    return dict(
        wq=wq, bq=bq, wk=wk, bk=bk, wv=wv, bv=bv,
        w1=w1, b1=b1, w2=w2, b2=b2,
        g1=jnp.ones((T, d), jnp.float32), be1=jnp.zeros((T, d), jnp.float32),
        g2=jnp.ones((T, d), jnp.float32), be2=jnp.zeros((T, d), jnp.float32),
    )


def reference(x, p):
    """Pure-JAX f32 reference mirroring the PyTorch forward (eval mode)."""
    d = x.shape[-1]

    def ln(h, g, b):
        mean = jnp.mean(h, axis=-1, keepdims=True)
        var = jnp.sum((h - mean) ** 2, axis=-1, keepdims=True) / (d - 1)
        return g * (h - mean) / (jnp.sqrt(var) + EPS) + b

    q = x @ p["wq"] + p["bq"]
    k = x @ p["wk"] + p["bk"]
    v = x @ p["wv"] + p["bv"]
    s = jnp.einsum("btd,bsd->bts", q, k) / (d ** 0.5)
    s = jax.nn.softmax(s, axis=-1)
    attn = jnp.einsum("bts,bsd->btd", s, v)
    h = ln(attn + x, p["g1"], p["be1"])
    ff = jnp.maximum(h @ p["w1"] + p["b1"], 0.0) @ p["w2"] + p["b2"]
    return ln(ff + h, p["g2"], p["be2"])


if __name__ == "__main__":
    B, T, d = 2, 8, 32   # batch, max_len, input_dim
    key = jax.random.PRNGKey(0)
    kx, kp = jax.random.split(key)
    x = jax.random.normal(kx, (B, T, d), jnp.float32)
    params = init_params(kp, T, d)

    padded = pad_and_fuse_params(params, d)   # once, outside the per-call path

    out = jax.block_until_ready(transformer_block(x, padded))
    ref = reference(x, params)

    assert out.shape == (B, T, d)
    # Tolerance reflects bf16 MXU operands (accumulation is f32); layernorm's
    # reciprocal is Newton-refined, softmax uses the approximate EUP recip.
    assert jnp.allclose(out, ref, atol=2e-2, rtol=2e-2), "mismatch vs reference"
    print("KERNEL_OK")
</pallas_src>

<mosaic_0001>
module attributes {stable_mosaic.version = 11 : i64} {
  func.func @_block_kernel(%arg0: memref<16x128xf32, #tpu.memory_space<vmem>>, %arg1: memref<128x384xbf16, #tpu.memory_space<vmem>>, %arg2: memref<1x384xf32, #tpu.memory_space<vmem>>, %arg3: memref<128x128xbf16, #tpu.memory_space<vmem>>, %arg4: memref<1x128xf32, #tpu.memory_space<vmem>>, %arg5: memref<128x128xbf16, #tpu.memory_space<vmem>>, %arg6: memref<1x128xf32, #tpu.memory_space<vmem>>, %arg7: memref<8x128xf32, #tpu.memory_space<vmem>>, %arg8: memref<8x128xf32, #tpu.memory_space<vmem>>, %arg9: memref<8x128xf32, #tpu.memory_space<vmem>>, %arg10: memref<8x128xf32, #tpu.memory_space<vmem>>, %arg11: memref<16x128xf32, #tpu.memory_space<vmem>>) attributes {dimension_semantics = [], scalar_prefetch = 0 : i64, scratch_operands = 0 : i64, tpu.core_type = #tpu.core_type<tc>} {
    %c0 = arith.constant 0 : index
    %c0_0 = arith.constant 0 : index
    %0 = vector.load %arg0[%c0, %c0_0] : memref<16x128xf32, #tpu.memory_space<vmem>>, vector<16x128xf32>
    %1 = tpu.iota {dimensions = array<i32: 2>} : vector<1x1x128xi32>
    %c32_i32 = arith.constant 32 : i32
    %2 = vector.broadcast %c32_i32 : i32 to vector<1x1x128xi32>
    %3 = arith.cmpi slt, %1, %2 : vector<1x1x128xi32>
    %4 = arith.extui %3 : vector<1x1x128xi1> to vector<1x1x128xi32>
    %5 = arith.sitofp %4 : vector<1x1x128xi32> to vector<1x1x128xf32>
    %6 = arith.truncf %0 : vector<16x128xf32> to vector<16x128xbf16>
    %c0_1 = arith.constant 0 : index
    %c0_2 = arith.constant 0 : index
    %7 = vector.load %arg1[%c0_1, %c0_2] : memref<128x384xbf16, #tpu.memory_space<vmem>>, vector<128x384xbf16>
    %cst = arith.constant dense<0.000000e+00> : vector<16x384xf32>
    %8 = tpu.matmul %6, %7, %cst {dimension_numbers = #tpu.dot_dimension_numbers<[1], [0], [0], [1], [0, 0, 1, 1], [], []>} : vector<16x128xbf16>, vector<128x384xbf16>, vector<16x384xf32> -> vector<16x384xf32>
    %c0_3 = arith.constant 0 : index
    %c0_4 = arith.constant 0 : index
    %9 = vector.load %arg2[%c0_3, %c0_4] : memref<1x384xf32, #tpu.memory_space<vmem>>, vector<1x384xf32>
    %10 = vector.broadcast %9 : vector<1x384xf32> to vector<16x384xf32>
    %11 = arith.addf %8, %10 : vector<16x384xf32>
    %12 = vector.extract_strided_slice %11 {offsets = [0, 0], sizes = [16, 128], strides = [1, 1]} : vector<16x384xf32> to vector<16x128xf32>
    %13 = vector.shape_cast %12 : vector<16x128xf32> to vector<2x8x128xf32>
    %14 = vector.extract_strided_slice %11 {offsets = [0, 128], sizes = [16, 128], strides = [1, 1]} : vector<16x384xf32> to vector<16x128xf32>
    %15 = vector.shape_cast %14 : vector<16x128xf32> to vector<2x8x128xf32>
    %16 = vector.extract_strided_slice %11 {offsets = [0, 256], sizes = [16, 128], strides = [1, 1]} : vector<16x384xf32> to vector<16x128xf32>
    %17 = vector.shape_cast %16 : vector<16x128xf32> to vector<2x8x128xf32>
    %18 = arith.truncf %13 : vector<2x8x128xf32> to vector<2x8x128xbf16>
    %19 = arith.truncf %15 : vector<2x8x128xf32> to vector<2x8x128xbf16>
    "tpu.trace_start"() <{level = 10 : i32, message = "btd,bsd->bts"}> : () -> ()
    %cst_5 = arith.constant dense<0.000000e+00> : vector<2x8x8xf32>
    %20 = tpu.matmul %18, %19, %cst_5 {dimension_numbers = #tpu.dot_dimension_numbers<[2], [2], [1], [1], [0, 0, 0, 1, 1, 1], [0], [0]>} : vector<2x8x128xbf16>, vector<2x8x128xbf16>, vector<2x8x8xf32> -> vector<2x8x8xf32>
    "tpu.trace_stop"() : () -> ()
    %cst_6 = arith.constant 0.176776692 : f32
    %21 = vector.broadcast %cst_6 : f32 to vector<2x8x8xf32>
    %22 = arith.mulf %20, %21 : vector<2x8x8xf32>
    %cst_7 = arith.constant dense<0xFF800000> : vector<2x8xf32>
    %23 = vector.multi_reduction <maximumf>, %22, %cst_7 [2] : vector<2x8x8xf32> to vector<2x8xf32>
    %24 = vector.shape_cast %23 : vector<2x8xf32> to vector<2x8x1xf32>
    %25 = vector.broadcast %24 : vector<2x8x1xf32> to vector<2x8x8xf32>
    %26 = arith.subf %22, %25 : vector<2x8x8xf32>
    %27 = math.exp %26 : vector<2x8x8xf32>
    %cst_8 = arith.constant dense<0.000000e+00> : vector<2x8xf32>
    %28 = vector.multi_reduction <add>, %27, %cst_8 [2] : vector<2x8x8xf32> to vector<2x8xf32>
    %29 = vector.shape_cast %28 : vector<2x8xf32> to vector<2x8x1xf32>
    %30 = tpu.reciprocal %29 {approx = true} : vector<2x8x1xf32> -> vector<2x8x1xf32>
    %31 = vector.broadcast %30 : vector<2x8x1xf32> to vector<2x8x8xf32>
    %32 = arith.mulf %27, %31 : vector<2x8x8xf32>
    %33 = arith.truncf %32 : vector<2x8x8xf32> to vector<2x8x8xbf16>
    %34 = arith.truncf %17 : vector<2x8x128xf32> to vector<2x8x128xbf16>
    "tpu.trace_start"() <{level = 10 : i32, message = "bts,bsd->btd"}> : () -> ()
    %cst_9 = arith.constant dense<0.000000e+00> : vector<2x8x128xf32>
    %35 = tpu.matmul %33, %34, %cst_9 {dimension_numbers = #tpu.dot_dimension_numbers<[2], [1], [1], [2], [0, 0, 0, 1, 1, 2], [0], [0]>} : vector<2x8x8xbf16>, vector<2x8x128xbf16>, vector<2x8x128xf32> -> vector<2x8x128xf32>
    "tpu.trace_stop"() : () -> ()
    %36 = vector.shape_cast %0 : vector<16x128xf32> to vector<2x8x128xf32>
    %37 = arith.addf %35, %36 : vector<2x8x128xf32>
    %c0_10 = arith.constant 0 : index
    %c0_11 = arith.constant 0 : index
    %38 = vector.load %arg7[%c0_10, %c0_11] : memref<8x128xf32, #tpu.memory_space<vmem>>, vector<8x128xf32>
    %c0_12 = arith.constant 0 : index
    %c0_13 = arith.constant 0 : index
    %39 = vector.load %arg8[%c0_12, %c0_13] : memref<8x128xf32, #tpu.memory_space<vmem>>, vector<8x128xf32>
    %cst_14 = arith.constant dense<0.000000e+00> : vector<2x8xf32>
    %40 = vector.multi_reduction <add>, %37, %cst_14 [2] : vector<2x8x128xf32> to vector<2x8xf32>
    %41 = vector.shape_cast %40 : vector<2x8xf32> to vector<2x8x1xf32>
    %cst_15 = arith.constant 3.125000e-02 : f32
    %42 = vector.broadcast %cst_15 : f32 to vector<2x8x1xf32>
    %43 = arith.mulf %41, %42 : vector<2x8x1xf32>
    %44 = vector.broadcast %43 : vector<2x8x1xf32> to vector<2x8x128xf32>
    %45 = arith.subf %37, %44 : vector<2x8x128xf32>
    %46 = vector.broadcast %5 : vector<1x1x128xf32> to vector<2x8x128xf32>
    %47 = arith.mulf %45, %46 : vector<2x8x128xf32>
    %48 = arith.mulf %47, %47 : vector<2x8x128xf32>
    %cst_16 = arith.constant dense<0.000000e+00> : vector<2x8xf32>
    %49 = vector.multi_reduction <add>, %48, %cst_16 [2] : vector<2x8x128xf32> to vector<2x8xf32>
    %50 = vector.shape_cast %49 : vector<2x8xf32> to vector<2x8x1xf32>
    %cst_17 = arith.constant 0.0322580636 : f32
    %51 = vector.broadcast %cst_17 : f32 to vector<2x8x1xf32>
    %52 = arith.mulf %50, %51 : vector<2x8x1xf32>
    %53 = math.sqrt %52 : vector<2x8x1xf32>
    %cst_18 = arith.constant 9.99999993E-9 : f32
    %54 = vector.broadcast %cst_18 : f32 to vector<2x8x1xf32>
    %55 = arith.addf %53, %54 : vector<2x8x1xf32>
    %56 = tpu.reciprocal %55 {approx = true} : vector<2x8x1xf32> -> vector<2x8x1xf32>
    %57 = arith.mulf %55, %56 : vector<2x8x1xf32>
    %cst_19 = arith.constant 2.000000e+00 : f32
    %58 = vector.broadcast %cst_19 : f32 to vector<2x8x1xf32>
    %59 = arith.subf %58, %57 : vector<2x8x1xf32>
    %60 = arith.mulf %56, %59 : vector<2x8x1xf32>
    %61 = vector.shape_cast %38 : vector<8x128xf32> to vector<1x8x128xf32>
    %62 = vector.broadcast %61 : vector<1x8x128xf32> to vector<2x8x128xf32>
    %63 = arith.mulf %62, %47 : vector<2x8x128xf32>
    %64 = vector.broadcast %60 : vector<2x8x1xf32> to vector<2x8x128xf32>
    %65 = arith.mulf %63, %64 : vector<2x8x128xf32>
    %66 = vector.shape_cast %39 : vector<8x128xf32> to vector<1x8x128xf32>
    %67 = vector.broadcast %66 : vector<1x8x128xf32> to vector<2x8x128xf32>
    %68 = arith.addf %65, %67 : vector<2x8x128xf32>
    %69 = vector.shape_cast %68 : vector<2x8x128xf32> to vector<16x128xf32>
    %70 = arith.truncf %69 : vector<16x128xf32> to vector<16x128xbf16>
    %c0_20 = arith.constant 0 : index
    %c0_21 = arith.constant 0 : index
    %71 = vector.load %arg3[%c0_20, %c0_21] : memref<128x128xbf16, #tpu.memory_space<vmem>>, vector<128x128xbf16>
    %cst_22 = arith.constant dense<0.000000e+00> : vector<16x128xf32>
    %72 = tpu.matmul %70, %71, %cst_22 {dimension_numbers = #tpu.dot_dimension_numbers<[1], [0], [0], [1], [0, 0, 1, 1], [], []>} : vector<16x128xbf16>, vector<128x128xbf16>, vector<16x128xf32> -> vector<16x128xf32>
    %c0_23 = arith.constant 0 : index
    %c0_24 = arith.constant 0 : index
    %73 = vector.load %arg4[%c0_23, %c0_24] : memref<1x128xf32, #tpu.memory_space<vmem>>, vector<1x128xf32>
    %74 = vector.broadcast %73 : vector<1x128xf32> to vector<16x128xf32>
    %75 = arith.addf %72, %74 : vector<16x128xf32>
    %cst_25 = arith.constant 0.000000e+00 : f32
    %76 = vector.broadcast %cst_25 : f32 to vector<16x128xf32>
    %77 = arith.maximumf %75, %76 : vector<16x128xf32>
    %78 = arith.truncf %77 : vector<16x128xf32> to vector<16x128xbf16>
    %c0_26 = arith.constant 0 : index
    %c0_27 = arith.constant 0 : index
    %79 = vector.load %arg5[%c0_26, %c0_27] : memref<128x128xbf16, #tpu.memory_space<vmem>>, vector<128x128xbf16>
    %cst_28 = arith.constant dense<0.000000e+00> : vector<16x128xf32>
    %80 = tpu.matmul %78, %79, %cst_28 {dimension_numbers = #tpu.dot_dimension_numbers<[1], [0], [0], [1], [0, 0, 1, 1], [], []>} : vector<16x128xbf16>, vector<128x128xbf16>, vector<16x128xf32> -> vector<16x128xf32>
    %c0_29 = arith.constant 0 : index
    %c0_30 = arith.constant 0 : index
    %81 = vector.load %arg6[%c0_29, %c0_30] : memref<1x128xf32, #tpu.memory_space<vmem>>, vector<1x128xf32>
    %82 = vector.broadcast %81 : vector<1x128xf32> to vector<16x128xf32>
    %83 = arith.addf %80, %82 : vector<16x128xf32>
    %84 = vector.shape_cast %83 : vector<16x128xf32> to vector<2x8x128xf32>
    %85 = arith.addf %84, %68 : vector<2x8x128xf32>
    %c0_31 = arith.constant 0 : index
    %c0_32 = arith.constant 0 : index
    %86 = vector.load %arg9[%c0_31, %c0_32] : memref<8x128xf32, #tpu.memory_space<vmem>>, vector<8x128xf32>
    %c0_33 = arith.constant 0 : index
    %c0_34 = arith.constant 0 : index
    %87 = vector.load %arg10[%c0_33, %c0_34] : memref<8x128xf32, #tpu.memory_space<vmem>>, vector<8x128xf32>
    %cst_35 = arith.constant dense<0.000000e+00> : vector<2x8xf32>
    %88 = vector.multi_reduction <add>, %85, %cst_35 [2] : vector<2x8x128xf32> to vector<2x8xf32>
    %89 = vector.shape_cast %88 : vector<2x8xf32> to vector<2x8x1xf32>
    %cst_36 = arith.constant 3.125000e-02 : f32
    %90 = vector.broadcast %cst_36 : f32 to vector<2x8x1xf32>
    %91 = arith.mulf %89, %90 : vector<2x8x1xf32>
    %92 = vector.broadcast %91 : vector<2x8x1xf32> to vector<2x8x128xf32>
    %93 = arith.subf %85, %92 : vector<2x8x128xf32>
    %94 = vector.broadcast %5 : vector<1x1x128xf32> to vector<2x8x128xf32>
    %95 = arith.mulf %93, %94 : vector<2x8x128xf32>
    %96 = arith.mulf %95, %95 : vector<2x8x128xf32>
    %cst_37 = arith.constant dense<0.000000e+00> : vector<2x8xf32>
    %97 = vector.multi_reduction <add>, %96, %cst_37 [2] : vector<2x8x128xf32> to vector<2x8xf32>
    %98 = vector.shape_cast %97 : vector<2x8xf32> to vector<2x8x1xf32>
    %cst_38 = arith.constant 0.0322580636 : f32
    %99 = vector.broadcast %cst_38 : f32 to vector<2x8x1xf32>
    %100 = arith.mulf %98, %99 : vector<2x8x1xf32>
    %101 = math.sqrt %100 : vector<2x8x1xf32>
    %cst_39 = arith.constant 9.99999993E-9 : f32
    %102 = vector.broadcast %cst_39 : f32 to vector<2x8x1xf32>
    %103 = arith.addf %101, %102 : vector<2x8x1xf32>
    %104 = tpu.reciprocal %103 {approx = true} : vector<2x8x1xf32> -> vector<2x8x1xf32>
    %105 = arith.mulf %103, %104 : vector<2x8x1xf32>
    %cst_40 = arith.constant 2.000000e+00 : f32
    %106 = vector.broadcast %cst_40 : f32 to vector<2x8x1xf32>
    %107 = arith.subf %106, %105 : vector<2x8x1xf32>
    %108 = arith.mulf %104, %107 : vector<2x8x1xf32>
    %109 = vector.shape_cast %86 : vector<8x128xf32> to vector<1x8x128xf32>
    %110 = vector.broadcast %109 : vector<1x8x128xf32> to vector<2x8x128xf32>
    %111 = arith.mulf %110, %95 : vector<2x8x128xf32>
    %112 = vector.broadcast %108 : vector<2x8x1xf32> to vector<2x8x128xf32>
    %113 = arith.mulf %111, %112 : vector<2x8x128xf32>
    %114 = vector.shape_cast %87 : vector<8x128xf32> to vector<1x8x128xf32>
    %115 = vector.broadcast %114 : vector<1x8x128xf32> to vector<2x8x128xf32>
    %116 = arith.addf %113, %115 : vector<2x8x128xf32>
    %117 = vector.shape_cast %116 : vector<2x8x128xf32> to vector<16x128xf32>
    %c0_41 = arith.constant 0 : index
    %c0_42 = arith.constant 0 : index
    %118 = vector.load %arg11[%c0_41, %c0_42] : memref<16x128xf32, #tpu.memory_space<vmem>>, vector<16x128xf32>
    tpu.vector_store %arg11[%c0_41, %c0_42], %117 {strides = array<i32>} : memref<16x128xf32, #tpu.memory_space<vmem>>, vector<16x128xf32>,
    return
  }
}

</mosaic_0001>

<llo_original>
// kernel: transformer_block.1
$region0: #{transformer_block.1}
  #allocation0 [shape = 'u32[]', space=smem, size = 0x4, offset = 0x4, fixed_abs, tag = 'smem constant byte address 0x4 - core index']
  #allocation1 [shape = 'u32[144,128]{1,0:T(1,128)}', space=vmem, size = 0x12000, scoped, tag = 'internal scratch']
  %s0 = inlined_call_operand.vmem [shape: f32[16,128], index: 0, kind: input, shape index: {}]
  %s1 = inlined_call_operand.hbm [shape: bf16[128,384], index: 1, kind: input, shape index: {}]
  %s2 = inlined_call_operand.vmem [shape: f32[1,384], index: 2, kind: input, shape index: {}]
  %s3 = inlined_call_operand.vmem [shape: bf16[128,128], index: 3, kind: input, shape index: {}]
  %s4 = inlined_call_operand.hbm [shape: f32[1,128], index: 4, kind: input, shape index: {}]
  %s5 = inlined_call_operand.hbm [shape: bf16[128,128], index: 5, kind: input, shape index: {}]
  %s6 = inlined_call_operand.hbm [shape: f32[1,128], index: 6, kind: input, shape index: {}]
  %s7 = inlined_call_operand.hbm [shape: f32[8,128], index: 7, kind: input, shape index: {}]
  %s8 = inlined_call_operand.hbm [shape: f32[8,128], index: 8, kind: input, shape index: {}]
  %s9 = inlined_call_operand.hbm [shape: f32[8,128], index: 9, kind: input, shape index: {}]
  %s10 = inlined_call_operand.hbm [shape: f32[8,128], index: 10, kind: input, shape index: {}]
  %s11 = inlined_call_operand.vmem [shape: f32[16,128], index: 11, kind: output, shape index: {}]
  %s12 = sld [smem:[#allocation0]]
  $region86: #{transformer_block.1} parent=0
    _
  %s14 = ssub.s32 1, %s12
  %s15 = scalar_select 0, %s14, %s12
  $region1: #{transformer_block.1} parent=0
    #allocation2 [shape = 'u8[98304]{0}', space=vmem, size = 0x18000, scoped, tag = 'input window, operand 1, single buffered']
    #allocation3 [shape = 's32[1]{0}', space=sflag, size = 0x4, scoped, tag = 'scoped memory for transformer_block.1']
    #allocation4 [shape = 'u8[512]{0}', space=vmem, size = 0x400, scoped, tag = 'input window, operand 4, single buffered']
    #allocation5 [shape = 's32[1]{0}', space=sflag, size = 0x4, scoped, tag = 'scoped memory for transformer_block.1']
    #allocation6 [shape = 'u8[32768]{0}', space=vmem, size = 0x8000, scoped, tag = 'input window, operand 5, single buffered']
    #allocation7 [shape = 'u8[512]{0}', space=vmem, size = 0x400, scoped, tag = 'input window, operand 6, single buffered']
    #allocation8 [shape = 's32[1]{0}', space=sflag, size = 0x4, scoped, tag = 'scoped memory for transformer_block.1']
    #allocation9 [shape = 'u8[4096]{0}', space=vmem, size = 0x1000, scoped, tag = 'input window, operand 7, single buffered']
    #allocation10 [shape = 'u8[4096]{0}', space=vmem, size = 0x1000, scoped, tag = 'input window, operand 8, single buffered']
    #allocation11 [shape = 's32[1]{0}', space=sflag, size = 0x4, scoped, tag = 'scoped memory for transformer_block.1']
    #allocation12 [shape = 'u8[4096]{0}', space=vmem, size = 0x1000, scoped, tag = 'input window, operand 9, single buffered']
    #allocation13 [shape = 'u8[4096]{0}', space=vmem, size = 0x1000, scoped, tag = 'input window, operand 10, single buffered']
    #allocation14 [shape = 's32[1]{0}', space=sflag, size = 0x4, scoped, tag = 'scoped memory for transformer_block.1']
    %16 = vsyncpa [#allocation3], 0
    %17 = vsyncpa [#allocation5], 0
    %18 = vsyncpa [#allocation8], 0
    %19 = vsyncpa [#allocation11], 0
    %20 = vsyncpa [#allocation14], 0
    // Predicated region
    $region2: #{transformer_block.1} parent=1 // pred_check
      _
    $region3: #{transformer_block.1} parent=1 // pred_check_branch
      %22 = sbr.rel (0) target = $region5
    $region4: #{transformer_block.1} parent=1 // pred_region
      _
    $region5: #{transformer_block.1} parent=1 // pred_fallthru
      _
    // Predicated region
    $region6: #{transformer_block.1} parent=1 // pred_check
      _
    $region7: #{transformer_block.1} parent=1 // pred_check_branch
      %24 = sbr.rel (0) target = $region9
    $region8: #{transformer_block.1} parent=1 // pred_region
      %s26 = ssub.s32 3072, 3072
      %27 = vsyncadd [#allocation3], %s26
      %s28 = sshll.u32 [#allocation2], 4
      %s29 = int_to_ptr.vmem [resolvable:$true] %s28
      %34 = dma.hbm_to_vmem [thread:$0]  %s1, 3072, %s29, [#allocation3], 192, 192, 12
    $region9: #{transformer_block.1} parent=1 // pred_fallthru
      _
    // Predicated region
    $region10: #{transformer_block.1} parent=1 // pred_check
      _
    $region11: #{transformer_block.1} parent=1 // pred_check_branch
      %36 = sbr.rel (0) target = $region13
    $region12: #{transformer_block.1} parent=1 // pred_region
      _
    $region13: #{transformer_block.1} parent=1 // pred_fallthru
      _
    // Predicated region
    $region14: #{transformer_block.1} parent=1 // pred_check
      _
    $region15: #{transformer_block.1} parent=1 // pred_check_branch
      %38 = sbr.rel (0) target = $region17
    $region16: #{transformer_block.1} parent=1 // pred_region
      _
    $region17: #{transformer_block.1} parent=1 // pred_fallthru
      _
    // Predicated region
    $region18: #{transformer_block.1} parent=1 // pred_check
      _
    $region19: #{transformer_block.1} parent=1 // pred_check_branch
      %40 = sbr.rel (0) target = $region21
    $region20: #{transformer_block.1} parent=1 // pred_region
      %s42 = ssub.s32 16, 16
      %43 = vsyncadd [#allocation5], %s42
      %s45 = sshll.u32 [#allocation4], 4
      %s46 = int_to_ptr.vmem [resolvable:$true] %s45
      %48 = dma.hbm_to_vmem [thread:$0]  %s4, 16, %s46, [#allocation5]
    $region21: #{transformer_block.1} parent=1 // pred_fallthru
      _
    // Predicated region
    $region22: #{transformer_block.1} parent=1 // pred_check
      _
    $region23: #{transformer_block.1} parent=1 // pred_check_branch
      %50 = sbr.rel (0) target = $region25
    $region24: #{transformer_block.1} parent=1 // pred_region
      %s52 = ssub.s32 1024, 1024
      %53 = vsyncadd [#allocation5], %s52
      %s54 = sshll.u32 [#allocation6], 4
      %s55 = int_to_ptr.vmem [resolvable:$true] %s54
      %60 = dma.hbm_to_vmem [thread:$0]  %s5, 1024, %s55, [#allocation5], 64, 64, 4
    $region25: #{transformer_block.1} parent=1 // pred_fallthru
      _
    // Predicated region
    $region26: #{transformer_block.1} parent=1 // pred_check
      _
    $region27: #{transformer_block.1} parent=1 // pred_check_branch
      %62 = sbr.rel (0) target = $region29
    $region28: #{transformer_block.1} parent=1 // pred_region
      %s64 = ssub.s32 16, 16
      %65 = vsyncadd [#allocation8], %s64
      %s67 = sshll.u32 [#allocation7], 4
      %s68 = int_to_ptr.vmem [resolvable:$true] %s67
      %70 = dma.hbm_to_vmem [thread:$0]  %s6, 16, %s68, [#allocation8]
    $region29: #{transformer_block.1} parent=1 // pred_fallthru
      _
    // Predicated region
    $region30: #{transformer_block.1} parent=1 // pred_check
      _
    $region31: #{transformer_block.1} parent=1 // pred_check_branch
      %72 = sbr.rel (0) target = $region33
    $region32: #{transformer_block.1} parent=1 // pred_region
      %s74 = ssub.s32 128, 128
      %75 = vsyncadd [#allocation8], %s74
      %s77 = sshll.u32 [#allocation9], 4
      %s78 = int_to_ptr.vmem [resolvable:$true] %s77
      %80 = dma.hbm_to_vmem [thread:$0]  %s7, 128, %s78, [#allocation8]
    $region33: #{transformer_block.1} parent=1 // pred_fallthru
      _
    // Predicated region
    $region34: #{transformer_block.1} parent=1 // pred_check
      _
    $region35: #{transformer_block.1} parent=1 // pred_check_branch
      %82 = sbr.rel (0) target = $region37
    $region36: #{transformer_block.1} parent=1 // pred_region
      %s84 = ssub.s32 128, 128
      %85 = vsyncadd [#allocation11], %s84
      %s87 = sshll.u32 [#allocation10], 4
      %s88 = int_to_ptr.vmem [resolvable:$true] %s87
      %90 = dma.hbm_to_vmem [thread:$0]  %s8, 128, %s88, [#allocation11]
    $region37: #{transformer_block.1} parent=1 // pred_fallthru
      _
    // Predicated region
    $region38: #{transformer_block.1} parent=1 // pred_check
      _
    $region39: #{transformer_block.1} parent=1 // pred_check_branch
      %92 = sbr.rel (0) target = $region41
    $region40: #{transformer_block.1} parent=1 // pred_region
      %s94 = ssub.s32 128, 128
      %95 = vsyncadd [#allocation11], %s94
      %s97 = sshll.u32 [#allocation12], 4
      %s98 = int_to_ptr.vmem [resolvable:$true] %s97
      %100 = dma.hbm_to_vmem [thread:$0]  %s9, 128, %s98, [#allocation11]
    $region41: #{transformer_block.1} parent=1 // pred_fallthru
      _
    // Predicated region
    $region42: #{transformer_block.1} parent=1 // pred_check
      _
    $region43: #{transformer_block.1} parent=1 // pred_check_branch
      %102 = sbr.rel (0) target = $region45
    $region44: #{transformer_block.1} parent=1 // pred_region
      %s104 = ssub.s32 128, 128
      %105 = vsyncadd [#allocation14], %s104
      %s107 = sshll.u32 [#allocation13], 4
      %s108 = int_to_ptr.vmem [resolvable:$true] %s107
      %110 = dma.hbm_to_vmem [thread:$0]  %s10, 128, %s108, [#allocation14]
    $region45: #{transformer_block.1} parent=1 // pred_fallthru
      _
    // Predicated region
    $region46: #{transformer_block.1} parent=1 // pred_check
      _
    $region47: #{transformer_block.1} parent=1 // pred_check_branch
      %112 = sbr.rel (0) target = $region49
    $region48: #{transformer_block.1} parent=1 // pred_region
      %113 = dma.done [#allocation3], 3072
    $region49: #{transformer_block.1} parent=1 // pred_fallthru
      _
    // Predicated region
    $region50: #{transformer_block.1} parent=1 // pred_check
      _
    $region51: #{transformer_block.1} parent=1 // pred_check_branch
      %115 = sbr.rel (0) target = $region53
    $region52: #{transformer_block.1} parent=1 // pred_region
      %116 = dma.done [#allocation5], 16
    $region53: #{transformer_block.1} parent=1 // pred_fallthru
      _
    // Predicated region
    $region54: #{transformer_block.1} parent=1 // pred_check
      _
    $region55: #{transformer_block.1} parent=1 // pred_check_branch
      %118 = sbr.rel (0) target = $region57
    $region56: #{transformer_block.1} parent=1 // pred_region
      %119 = dma.done [#allocation5], 1024
    $region57: #{transformer_block.1} parent=1 // pred_fallthru
      _
    // Predicated region
    $region58: #{transformer_block.1} parent=1 // pred_check
      _
    $region59: #{transformer_block.1} parent=1 // pred_check_branch
      %121 = sbr.rel (0) target = $region61
    $region60: #{transformer_block.1} parent=1 // pred_region
      %122 = dma.done [#allocation8], 16
    $region61: #{transformer_block.1} parent=1 // pred_fallthru
      _
    // Predicated region
    $region62: #{transformer_block.1} parent=1 // pred_check
      _
    $region63: #{transformer_block.1} parent=1 // pred_check_branch
      %124 = sbr.rel (0) target = $region65
    $region64: #{transformer_block.1} parent=1 // pred_region
      %125 = dma.done [#allocation8], 128
    $region65: #{transformer_block.1} parent=1 // pred_fallthru
      _
    // Predicated region
    $region66: #{transformer_block.1} parent=1 // pred_check
      _
    $region67: #{transformer_block.1} parent=1 // pred_check_branch
      %127 = sbr.rel (0) target = $region69
    $region68: #{transformer_block.1} parent=1 // pred_region
      %128 = dma.done [#allocation11], 128
    $region69: #{transformer_block.1} parent=1 // pred_fallthru
      _
    // Predicated region
    $region70: #{transformer_block.1} parent=1 // pred_check
      _
    $region71: #{transformer_block.1} parent=1 // pred_check_branch
      %130 = sbr.rel (0) target = $region73
    $region72: #{transformer_block.1} parent=1 // pred_region
      %131 = dma.done [#allocation11], 128
    $region73: #{transformer_block.1} parent=1 // pred_fallthru
      _
    // Predicated region
    $region74: #{transformer_block.1} parent=1 // pred_check
      _
    $region75: #{transformer_block.1} parent=1 // pred_check_branch
      %133 = sbr.rel (0) target = $region77
    $region76: #{transformer_block.1} parent=1 // pred_region
      %134 = dma.done [#allocation14], 128
    $region77: #{transformer_block.1} parent=1 // pred_fallthru
      _
    %v136 = vld [vmem:[%s0] sm:$0xff]
    %v137 = vld [vmem:[%s0 + $0x8] sm:$0xff]
    %v138 = vlaneseq
    %v139 = vand.u32 %v138, 127
    %vm140 = vcmp.lt.s32.totalorder %v139, 32
    %v141 = vsel %vm140, 1, 0
    %v142 = vcvt.s32.f32 %v141
    %v143 = vpack.c.bf16 %v137, %v136
    %v144 = vld [vmem:[#allocation2] sm:$0xff]
    %v145 = vld [vmem:[#allocation2 + $0x8] sm:$0xf]
    %v146 = vld [vmem:[#allocation2 + $0xc] sm:$0xff]
    %v147 = vld [vmem:[#allocation2 + $0x14] sm:$0xf]
    %v148 = vld [vmem:[#allocation2 + $0x18] sm:$0xff]
    %v149 = vld [vmem:[#allocation2 + $0x20] sm:$0xf]
    %v150 = vld [vmem:[#allocation2 + $0x24] sm:$0xff]
    %v151 = vld [vmem:[#allocation2 + $0x2c] sm:$0xf]
    %v152 = vld [vmem:[#allocation2 + $0x30] sm:$0xff]
    %v153 = vld [vmem:[#allocation2 + $0x38] sm:$0xf]
    %v154 = vld [vmem:[#allocation2 + $0x3c] sm:$0xff]
    %v155 = vld [vmem:[#allocation2 + $0x44] sm:$0xf]
    %v156 = vld [vmem:[#allocation2 + $0x48] sm:$0xff]
    %v157 = vld [vmem:[#allocation2 + $0x50] sm:$0xf]
    %v158 = vld [vmem:[#allocation2 + $0x54] sm:$0xff]
    %v159 = vld [vmem:[#allocation2 + $0x5c] sm:$0xf]
    %v160 = vld [vmem:[#allocation2 + $0x60] sm:$0xff]
    %v161 = vld [vmem:[#allocation2 + $0x68] sm:$0xf]
    %v162 = vld [vmem:[#allocation2 + $0x6c] sm:$0xff]
    %v163 = vld [vmem:[#allocation2 + $0x74] sm:$0xf]
    %v164 = vld [vmem:[#allocation2 + $0x78] sm:$0xff]
    %v165 = vld [vmem:[#allocation2 + $0x80] sm:$0xf]
    %v166 = vld [vmem:[#allocation2 + $0x84] sm:$0xff]
    %v167 = vld [vmem:[#allocation2 + $0x8c] sm:$0xf]
    %v168 = vld [vmem:[#allocation2 + $0x90] sm:$0xff]
    %v169 = vld [vmem:[#allocation2 + $0x98] sm:$0xf]
    %v170 = vld [vmem:[#allocation2 + $0x9c] sm:$0xff]
    %v171 = vld [vmem:[#allocation2 + $0xa4] sm:$0xf]
    %v172 = vld [vmem:[#allocation2 + $0xa8] sm:$0xff]
    %v173 = vld [vmem:[#allocation2 + $0xb0] sm:$0xf]
    %v174 = vld [vmem:[#allocation2 + $0xb4] sm:$0xff]
    %v175 = vld [vmem:[#allocation2 + $0xbc] sm:$0xf]
    %v176 = vld [vmem:[%s2] sm:$0x7]
    %v178 = vlaneseq
    %v179 = vshrl.u32 %v178, 7
    %v180 = vsub.s32 0, %v179
    %v181 = vrot.slane %v176, %v180
    %v182 = vlaneseq
    %v183 = vshrl.u32 %v182, 7
    %v184 = vsub.s32 1, %v183
    %v185 = vrot.slane %v176, %v184
    %v186 = vlaneseq
    %v187 = vshrl.u32 %v186, 7
    %v188 = vsub.s32 2, %v187
    %v189 = vrot.slane %v176, %v188
    %v225 = vunpack.c.l.b16 %v144
    %v226 = vunpack.c.h.b16 %v144
    %v227 = vunpack.c.l.b16 %v145
    %v228 = vunpack.c.l.b16 %v146
    %v229 = vunpack.c.h.b16 %v146
    %v230 = vunpack.c.l.b16 %v147
    %v231 = vunpack.c.l.b16 %v148
    %v232 = vunpack.c.h.b16 %v148
    %v233 = vunpack.c.l.b16 %v149
    %v234 = vunpack.c.l.b16 %v150
    %v235 = vunpack.c.h.b16 %v150
    %v236 = vunpack.c.l.b16 %v151
    %v237 = vunpack.c.l.b16 %v152
    %v238 = vunpack.c.h.b16 %v152
    %v239 = vunpack.c.l.b16 %v153
    %v240 = vunpack.c.l.b16 %v154
    %v241 = vunpack.c.h.b16 %v154
    %v242 = vunpack.c.l.b16 %v155
    %v243 = vunpack.c.l.b16 %v156
    %v244 = vunpack.c.h.b16 %v156
    %v245 = vunpack.c.l.b16 %v157
    %v246 = vunpack.c.l.b16 %v158
    %v247 = vunpack.c.h.b16 %v158
    %v248 = vunpack.c.l.b16 %v159
    %v249 = vunpack.c.l.b16 %v160
    %v250 = vunpack.c.h.b16 %v160
    %v251 = vunpack.c.l.b16 %v161
    %v252 = vunpack.c.l.b16 %v162
    %v253 = vunpack.c.h.b16 %v162
    %v254 = vunpack.c.l.b16 %v163
    %v255 = vunpack.c.l.b16 %v164
    %v256 = vunpack.c.h.b16 %v164
    %v257 = vunpack.c.l.b16 %v165
    %v258 = vunpack.c.l.b16 %v166
    %v259 = vunpack.c.h.b16 %v166
    %v260 = vunpack.c.l.b16 %v167
    %v261 = vunpack.c.l.b16 %v168
    %v262 = vunpack.c.h.b16 %v168
    %v263 = vunpack.c.l.b16 %v169
    %v264 = vunpack.c.l.b16 %v170
    %v265 = vunpack.c.h.b16 %v170
    %v266 = vunpack.c.l.b16 %v171
    %v267 = vunpack.c.l.b16 %v172
    %v268 = vunpack.c.h.b16 %v172
    %v269 = vunpack.c.l.b16 %v173
    %v270 = vunpack.c.l.b16 %v174
    %v271 = vunpack.c.h.b16 %v174
    %v272 = vunpack.c.l.b16 %v175
    %v273 = vpack.c.b16 %v228, %v225
    %v274 = vpack.c.b16 %v229, %v226
    %v275 = vpack.c.b16 %v230, %v227
    %v276 = vpack.c.b16 %v234, %v231
    %v277 = vpack.c.b16 %v235, %v232
    %v278 = vpack.c.b16 %v236, %v233
    %v279 = vpack.c.b16 %v240, %v237
    %v280 = vpack.c.b16 %v241, %v238
    %v281 = vpack.c.b16 %v242, %v239
    %v282 = vpack.c.b16 %v246, %v243
    %v283 = vpack.c.b16 %v247, %v244
    %v284 = vpack.c.b16 %v248, %v245
    %v285 = vpack.c.b16 %v252, %v249
    %v286 = vpack.c.b16 %v253, %v250
    %v287 = vpack.c.b16 %v254, %v251
    %v288 = vpack.c.b16 %v258, %v255
    %v289 = vpack.c.b16 %v259, %v256
    %v290 = vpack.c.b16 %v260, %v257
    %v291 = vpack.c.b16 %v264, %v261
    %v292 = vpack.c.b16 %v265, %v262
    %v293 = vpack.c.b16 %v266, %v263
    %v294 = vpack.c.b16 %v270, %v267
    %v295 = vpack.c.b16 %v271, %v268
    %v296 = vpack.c.b16 %v272, %v269
    %321 = vmatprep.subr.bf16.mxu0 %v274
    %322 = vmatpush1.bf16.msra.mxu0 %v273
    %323 = vmatprep.subr.bf16.mxu0 %v277
    %324 = vmatpush1.bf16.msra.mxu0 %v276
    %325 = vmatprep.subr.bf16.mxu0 %v280
    %326 = vmatpush1.bf16.msra.mxu0 %v279
    %327 = vmatprep.subr.bf16.mxu0 %v283
    %328 = vmatpush1.bf16.msra.mxu0 %v282
    %329 = vmatprep.subr.bf16.mxu0 %v286
    %330 = vmatpush1.bf16.msra.mxu0 %v285
    %331 = vmatprep.subr.bf16.mxu0 %v289
    %332 = vmatpush1.bf16.msra.mxu0 %v288
    %333 = vmatprep.subr.bf16.mxu0 %v292
    %334 = vmatpush1.bf16.msra.mxu0 %v291
    %335 = vmatprep.subr.bf16.mxu0 %v295
    %336 = vmatpush1.bf16.msra.mxu0 %v294
    %337 = vmatprep.subr.bf16.mxu0 0
    %338 = vmatpush1.bf16.msra.mxu0 0
    %339 = vmatprep.subr.bf16.mxu0 0
    %340 = vmatpush1.bf16.msra.mxu0 0
    %341 = vmatprep.subr.bf16.mxu0 0
    %342 = vmatpush1.bf16.msra.mxu0 0
    %343 = vmatprep.subr.bf16.mxu0 0
    %344 = vmatpush1.bf16.msra.mxu0 0
    %345 = vmatprep.subr.bf16.mxu0 0
    %346 = vmatpush1.bf16.msra.mxu0 0
    %347 = vmatprep.subr.bf16.mxu0 0
    %348 = vmatpush1.bf16.msra.mxu0 0
    %349 = vmatprep.subr.bf16.mxu0 0
    %350 = vmatpush1.bf16.msra.mxu0 0
    %351 = vmatprep.subr.bf16.mxu0 0
    %352 = vmatpush1.bf16.msra.mxu0 0
    %353 = vmatprep.mubr.bf16.mxu0 0
    %354 = vmatmul.mubr.bf16.gmra.mrb[0].mxu0 %v143
    %v355 = vpop.f32.mrb[0].mxu0
    %v356 = vadd.f32 %v181, %v355
    %v357 = vpop.f32.mrb[0].mxu0
    %v358 = vadd.f32 %v185, %v357
    %v359 = vpop.f32.mrb[0].mxu0
    %v360 = vadd.f32 %v181, %v359
    %v361 = vpop.f32.mrb[0].mxu0
    %v362 = vadd.f32 %v185, %v361
    %363 = vdwg.mxu0
    %364 = vmatprep.subr.bf16.mxu0 0
    %365 = vmatpush1.bf16.msra.mxu0 %v275
    %366 = vmatprep.subr.bf16.mxu0 0
    %367 = vmatpush1.bf16.msra.mxu0 %v278
    %368 = vmatprep.subr.bf16.mxu0 0
    %369 = vmatpush1.bf16.msra.mxu0 %v281
    %370 = vmatprep.subr.bf16.mxu0 0
    %371 = vmatpush1.bf16.msra.mxu0 %v284
    %372 = vmatprep.subr.bf16.mxu0 0
    %373 = vmatpush1.bf16.msra.mxu0 %v287
    %374 = vmatprep.subr.bf16.mxu0 0
    %375 = vmatpush1.bf16.msra.mxu0 %v290
    %376 = vmatprep.subr.bf16.mxu0 0
    %377 = vmatpush1.bf16.msra.mxu0 %v293
    %378 = vmatprep.subr.bf16.mxu0 0
    %379 = vmatpush1.bf16.msra.mxu0 %v296
    %380 = vmatprep.subr.bf16.mxu0 0
    %381 = vmatpush1.bf16.msra.mxu0 0
    %382 = vmatprep.subr.bf16.mxu0 0
    %383 = vmatpush1.bf16.msra.mxu0 0
    %384 = vmatprep.subr.bf16.mxu0 0
    %385 = vmatpush1.bf16.msra.mxu0 0
    %386 = vmatprep.subr.bf16.mxu0 0
    %387 = vmatpush1.bf16.msra.mxu0 0
    %388 = vmatprep.subr.bf16.mxu0 0
    %389 = vmatpush1.bf16.msra.mxu0 0
    %390 = vmatprep.subr.bf16.mxu0 0
    %391 = vmatpush1.bf16.msra.mxu0 0
    %392 = vmatprep.subr.bf16.mxu0 0
    %393 = vmatpush1.bf16.msra.mxu0 0
    %394 = vmatprep.subr.bf16.mxu0 0
    %395 = vmatpush1.bf16.msra.mxu0 0
    %396 = vmatprep.mubr.bf16.mxu0 0
    %397 = vmatmul.mubr.bf16.gmra.mrb[0].mxu0 %v143
    %v398 = vpop.f32.mrb[0].mxu0
    %v399 = vadd.f32 %v189, %v398
    %v400 = vpop.f32.mrb[0].mxu0
    %v401 = vpop.f32.mrb[0].mxu0
    %v402 = vadd.f32 %v189, %v401
    %v403 = vpop.f32.mrb[0].mxu0
    %404 = vdwg.mxu0
    %v405 = vpack.c.bf16 %v356, %v356
    %v406 = vpack.c.bf16 %v360, %v360
    %v407 = vpack.c.bf16 %v358, %v358
    %v408 = vpack.c.bf16 %v362, %v362
    %409 = vmatprep.subr.bf16.mxu0 0
    %410 = vmatpush1.bf16.xpose.msra.mxu0 %v407
    %411 = vmatprep.subr.bf16.mxu0 0
    %412 = vmatpush1.bf16.xpose.msra.mxu0 0
    %413 = vmatprep.subr.bf16.mxu0 0
    %414 = vmatpush1.bf16.xpose.msra.mxu0 0
    %415 = vmatprep.subr.bf16.mxu0 0
    %416 = vmatpush1.bf16.xpose.msra.mxu0 0
    %417 = vmatprep.subr.bf16.mxu0 0
    %418 = vmatpush1.bf16.xpose.msra.mxu0 0
    %419 = vmatprep.subr.bf16.mxu0 0
    %420 = vmatpush1.bf16.xpose.msra.mxu0 0
    %421 = vmatprep.subr.bf16.mxu0 0
    %422 = vmatpush1.bf16.xpose.msra.mxu0 0
    %423 = vmatprep.subr.bf16.mxu0 0
    %424 = vmatpush1.bf16.xpose.msra.mxu0 0
    %425 = vmatprep.subr.bf16.mxu0 0
    %426 = vmatpush1.bf16.xpose.msra.mxu0 0
    %427 = vmatprep.subr.bf16.mxu0 0
    %428 = vmatpush1.bf16.xpose.msra.mxu0 0
    %429 = vmatprep.subr.bf16.mxu0 0
    %430 = vmatpush1.bf16.xpose.msra.mxu0 0
    %431 = vmatprep.subr.bf16.mxu0 0
    %432 = vmatpush1.bf16.xpose.msra.mxu0 0
    %433 = vmatprep.subr.bf16.mxu0 0
    %434 = vmatpush1.bf16.xpose.msra.mxu0 0
    %435 = vmatprep.subr.bf16.mxu0 0
    %436 = vmatpush1.bf16.xpose.msra.mxu0 0
    %437 = vmatprep.subr.bf16.mxu0 0
    %438 = vmatpush1.bf16.xpose.msra.mxu0 0
    %439 = vmatprep.subr.bf16.mxu0 0
    %440 = vmatpush1.bf16.xpose.msra.mxu0 0
    %441 = vmatprep.mubr.bf16.mxu0 0
    %442 = vmatmul.mubr.bf16.gmra.mrb[0].mxu0 %v405
    %v443 = vpop.f32.mrb[0].mxu0
    %v444 = vadd.f32 0.0, %v443
    %v445 = vpop.f32.mrb[0].mxu0
    %v446 = vpop.f32.mrb[0].mxu0
    %v447 = vpop.f32.mrb[0].mxu0
    %448 = vdwg.mxu0
    %449 = vmatprep.subr.bf16.mxu0 0
    %450 = vmatpush1.bf16.xpose.msra.mxu0 %v408
    %451 = vmatprep.subr.bf16.mxu0 0
    %452 = vmatpush1.bf16.xpose.msra.mxu0 0
    %453 = vmatprep.subr.bf16.mxu0 0
    %454 = vmatpush1.bf16.xpose.msra.mxu0 0
    %455 = vmatprep.subr.bf16.mxu0 0
    %456 = vmatpush1.bf16.xpose.msra.mxu0 0
    %457 = vmatprep.subr.bf16.mxu0 0
    %458 = vmatpush1.bf16.xpose.msra.mxu0 0
    %459 = vmatprep.subr.bf16.mxu0 0
    %460 = vmatpush1.bf16.xpose.msra.mxu0 0
    %461 = vmatprep.subr.bf16.mxu0 0
    %462 = vmatpush1.bf16.xpose.msra.mxu0 0
    %463 = vmatprep.subr.bf16.mxu0 0
    %464 = vmatpush1.bf16.xpose.msra.mxu0 0
    %465 = vmatprep.subr.bf16.mxu0 0
    %466 = vmatpush1.bf16.xpose.msra.mxu0 0
    %467 = vmatprep.subr.bf16.mxu0 0
    %468 = vmatpush1.bf16.xpose.msra.mxu0 0
    %469 = vmatprep.subr.bf16.mxu0 0
    %470 = vmatpush1.bf16.xpose.msra.mxu0 0
    %471 = vmatprep.subr.bf16.mxu0 0
    %472 = vmatpush1.bf16.xpose.msra.mxu0 0
    %473 = vmatprep.subr.bf16.mxu0 0
    %474 = vmatpush1.bf16.xpose.msra.mxu0 0
    %475 = vmatprep.subr.bf16.mxu0 0
    %476 = vmatpush1.bf16.xpose.msra.mxu0 0
    %477 = vmatprep.subr.bf16.mxu0 0
    %478 = vmatpush1.bf16.xpose.msra.mxu0 0
    %479 = vmatprep.subr.bf16.mxu0 0
    %480 = vmatpush1.bf16.xpose.msra.mxu0 0
    %481 = vmatprep.mubr.bf16.mxu0 0
    %482 = vmatmul.mubr.bf16.gmra.mrb[0].mxu0 %v406
    %v483 = vpop.f32.mrb[0].mxu0
    %v484 = vadd.f32 0.0, %v483
    %v485 = vpop.f32.mrb[0].mxu0
    %v486 = vpop.f32.mrb[0].mxu0
    %v487 = vpop.f32.mrb[0].mxu0
    %488 = vdwg.mxu0
    %v489 = vmul.f32 %v444, 0.17677669
    %v490 = vmul.f32 %v484, 0.17677669
    %vm491 = vcmask 64512
    %v492 = vsel %vm491, %v489, -inf
    %493 = vmax.xlane.f32.xlu0 %v492
    %v494 = vpop.xlane.xlu0 %493
    %v495 = vsel %vm491, %v490, -inf
    %496 = vmax.xlane.f32.xlu0 %v495
    %v497 = vpop.xlane.xlu0 %496
    %v498 = vsub.f32 %v489, %v494
    %v499 = vsub.f32 %v490, %v497
    %v500 = vmul.f32 %v498, 1.442695
    %v501 = vpow.pop %v500
    %v502 = vmul.f32 %v499, 1.442695
    %v503 = vpow.pop %v502
    %v504 = vsel %vm491, %v501, 0.0
    %505 = vadd.xlane.f32.xlu0 %v504
    %v506 = vpop.xlane.xlu0 %505
    %v507 = vsel %vm491, %v503, 0.0
    %508 = vadd.xlane.f32.xlu0 %v507
    %v509 = vpop.xlane.xlu0 %508
    %v510 = vrcp.pop %v506
    %v511 = vrcp.pop %v509
    %v512 = vmul.f32 %v501, %v510
    %v513 = vmul.f32 %v503, %v511
    %v514 = vpack.c.bf16 %v512, %v512
    %v515 = vpack.c.bf16 %v513, %v513
    %v516 = vpack.c.bf16 %v399, %v399
    %v517 = vpack.c.bf16 %v402, %v402
    %v519 = vsel %vm491, %v514, 0
    %vm521 = vcmask 1043456
    %v523 = vsel %vm521, %v516, 0
    %525 = vmatprep.subr.bf16.mxu0 0
    %526 = vmatpush1.bf16.msra.mxu0 %v523
    %527 = vmatprep.subr.bf16.mxu0 0
    %528 = vmatpush1.bf16.msra.mxu0 0
    %529 = vmatprep.subr.bf16.mxu0 0
    %530 = vmatpush1.bf16.msra.mxu0 0
    %531 = vmatprep.subr.bf16.mxu0 0
    %532 = vmatpush1.bf16.msra.mxu0 0
    %533 = vmatprep.subr.bf16.mxu0 0
    %534 = vmatpush1.bf16.msra.mxu0 0
    %535 = vmatprep.subr.bf16.mxu0 0
    %536 = vmatpush1.bf16.msra.mxu0 0
    %537 = vmatprep.subr.bf16.mxu0 0
    %538 = vmatpush1.bf16.msra.mxu0 0
    %539 = vmatprep.subr.bf16.mxu0 0
    %540 = vmatpush1.bf16.msra.mxu0 0
    %541 = vmatprep.subr.bf16.mxu0 0
    %542 = vmatpush1.bf16.msra.mxu0 0
    %543 = vmatprep.subr.bf16.mxu0 0
    %544 = vmatpush1.bf16.msra.mxu0 0
    %545 = vmatprep.subr.bf16.mxu0 0
    %546 = vmatpush1.bf16.msra.mxu0 0
    %547 = vmatprep.subr.bf16.mxu0 0
    %548 = vmatpush1.bf16.msra.mxu0 0
    %549 = vmatprep.subr.bf16.mxu0 0
    %550 = vmatpush1.bf16.msra.mxu0 0
    %551 = vmatprep.subr.bf16.mxu0 0
    %552 = vmatpush1.bf16.msra.mxu0 0
    %553 = vmatprep.subr.bf16.mxu0 0
    %554 = vmatpush1.bf16.msra.mxu0 0
    %555 = vmatprep.subr.bf16.mxu0 0
    %556 = vmatpush1.bf16.msra.mxu0 0
    %557 = vmatprep.mubr.bf16.mxu0 0
    %558 = vmatmul.mubr.bf16.gmra.mrb[0].mxu0 %v519
    %v559 = vpop.f32.mrb[0].mxu0
    %v560 = vadd.f32 %v136, %v559
    %v561 = vpop.f32.mrb[0].mxu0
    %v562 = vpop.f32.mrb[0].mxu0
    %v563 = vpop.f32.mrb[0].mxu0
    %564 = vdwg.mxu0
    %v566 = vsel %vm491, %v515, 0
    %v569 = vsel %vm521, %v517, 0
    %571 = vmatprep.subr.bf16.mxu0 0
    %572 = vmatpush1.bf16.msra.mxu0 %v569
    %573 = vmatprep.subr.bf16.mxu0 0
    %574 = vmatpush1.bf16.msra.mxu0 0
    %575 = vmatprep.subr.bf16.mxu0 0
    %576 = vmatpush1.bf16.msra.mxu0 0
    %577 = vmatprep.subr.bf16.mxu0 0
    %578 = vmatpush1.bf16.msra.mxu0 0
    %579 = vmatprep.subr.bf16.mxu0 0
    %580 = vmatpush1.bf16.msra.mxu0 0
    %581 = vmatprep.subr.bf16.mxu0 0
    %582 = vmatpush1.bf16.msra.mxu0 0
    %583 = vmatprep.subr.bf16.mxu0 0
    %584 = vmatpush1.bf16.msra.mxu0 0
    %585 = vmatprep.subr.bf16.mxu0 0
    %586 = vmatpush1.bf16.msra.mxu0 0
    %587 = vmatprep.subr.bf16.mxu0 0
    %588 = vmatpush1.bf16.msra.mxu0 0
    %589 = vmatprep.subr.bf16.mxu0 0
    %590 = vmatpush1.bf16.msra.mxu0 0
    %591 = vmatprep.subr.bf16.mxu0 0
    %592 = vmatpush1.bf16.msra.mxu0 0
    %593 = vmatprep.subr.bf16.mxu0 0
    %594 = vmatpush1.bf16.msra.mxu0 0
    %595 = vmatprep.subr.bf16.mxu0 0
    %596 = vmatpush1.bf16.msra.mxu0 0
    %597 = vmatprep.subr.bf16.mxu0 0
    %598 = vmatpush1.bf16.msra.mxu0 0
    %599 = vmatprep.subr.bf16.mxu0 0
    %600 = vmatpush1.bf16.msra.mxu0 0
    %601 = vmatprep.subr.bf16.mxu0 0
    %602 = vmatpush1.bf16.msra.mxu0 0
    %603 = vmatprep.mubr.bf16.mxu0 0
    %604 = vmatmul.mubr.bf16.gmra.mrb[0].mxu0 %v566
    %v605 = vpop.f32.mrb[0].mxu0
    %v606 = vadd.f32 %v137, %v605
    %v607 = vpop.f32.mrb[0].mxu0
    %v608 = vpop.f32.mrb[0].mxu0
    %v609 = vpop.f32.mrb[0].mxu0
    %610 = vdwg.mxu0
    %v611 = vld [vmem:[#allocation9] sm:$0xff]
    %v612 = vld [vmem:[#allocation10] sm:$0xff]
    %613 = vadd.xlane.f32.xlu0 %v560
    %v614 = vpop.xlane.xlu0 %613
    %615 = vadd.xlane.f32.xlu0 %v606
    %v616 = vpop.xlane.xlu0 %615
    %v617 = vmul.f32 %v614, 0.03125
    %v618 = vmul.f32 %v616, 0.03125
    %v619 = vsub.f32 %v560, %v617
    %v620 = vsub.f32 %v606, %v618
    %v621 = vmul.f32 %v619, %v142
    %v622 = vmul.f32 %v620, %v142
    %v623 = vmul.f32 %v621, %v621
    %v624 = vmul.f32 %v622, %v622
    %625 = vadd.xlane.f32.xlu0 %v623
    %v626 = vpop.xlane.xlu0 %625
    %627 = vadd.xlane.f32.xlu0 %v624
    %v628 = vpop.xlane.xlu0 %627
    %v629 = vmul.f32 %v626, 0.032258064
    %v630 = vmul.f32 %v628, 0.032258064
    %v631 = vrsqrt.pop %v629
    %v632 = vmul.f32 %v629, %v631
    %vm633 = vcmp.eq.f32.partialorder %v629, inf
    %v634 = vsel %vm633, %v629, %v632
    %vm635 = vcmp.eq.f32.partialorder %v629, 0.0
    %v636 = vand.u32 %v629, 2147483648
    %v637 = vsel %vm635, %v636, %v634
    %v638 = vrsqrt.pop %v630
    %v639 = vmul.f32 %v630, %v638
    %vm640 = vcmp.eq.f32.partialorder %v630, inf
    %v641 = vsel %vm640, %v630, %v639
    %vm642 = vcmp.eq.f32.partialorder %v630, 0.0
    %v643 = vand.u32 %v630, 2147483648
    %v644 = vsel %vm642, %v643, %v641
    %v645 = vadd.f32 %v637, 1e-08
    %v646 = vadd.f32 %v644, 1e-08
    %v647 = vrcp.pop %v645
    %v648 = vrcp.pop %v646
    %v649 = vmul.f32 %v645, %v647
    %v650 = vmul.f32 %v646, %v648
    %v651 = vsub.f32 2.0, %v649
    %v652 = vsub.f32 2.0, %v650
    %v653 = vmul.f32 %v647, %v651
    %v654 = vmul.f32 %v648, %v652
    %v655 = vmul.f32 %v611, %v621
    %v656 = vmul.f32 %v611, %v622
    %v657 = vmul.f32 %v655, %v653
    %v658 = vmul.f32 %v656, %v654
    %v659 = vadd.f32 %v657, %v612
    %v660 = vadd.f32 %v658, %v612
    %v661 = vpack.c.bf16 %v660, %v659
    %v662 = vld [vmem:[%s3] sm:$0xf]
    %v663 = vld [vmem:[%s3 + $0x4] sm:$0xf]
    %v664 = vld [vmem:[%s3 + $0x8] sm:$0xf]
    %v665 = vld [vmem:[%s3 + $0xc] sm:$0xf]
    %v666 = vld [vmem:[%s3 + $0x10] sm:$0xf]
    %v667 = vld [vmem:[%s3 + $0x14] sm:$0xf]
    %v668 = vld [vmem:[%s3 + $0x18] sm:$0xf]
    %v669 = vld [vmem:[%s3 + $0x1c] sm:$0xf]
    %v670 = vld [vmem:[%s3 + $0x20] sm:$0xf]
    %v671 = vld [vmem:[%s3 + $0x24] sm:$0xf]
    %v672 = vld [vmem:[%s3 + $0x28] sm:$0xf]
    %v673 = vld [vmem:[%s3 + $0x2c] sm:$0xf]
    %v674 = vld [vmem:[%s3 + $0x30] sm:$0xf]
    %v675 = vld [vmem:[%s3 + $0x34] sm:$0xf]
    %v676 = vld [vmem:[%s3 + $0x38] sm:$0xf]
    %v677 = vld [vmem:[%s3 + $0x3c] sm:$0xf]
    %v678 = vld [vmem:[#allocation4] sm:$0x1]
    %v680 = vlaneseq
    %v681 = vshrl.u32 %v680, 7
    %v682 = vsub.s32 0, %v681
    %v683 = vrot.slane %v678, %v682
    %v701 = vunpack.c.l.b16 %v662
    %v702 = vunpack.c.l.b16 %v663
    %v703 = vunpack.c.l.b16 %v664
    %v704 = vunpack.c.l.b16 %v665
    %v705 = vunpack.c.l.b16 %v666
    %v706 = vunpack.c.l.b16 %v667
    %v707 = vunpack.c.l.b16 %v668
    %v708 = vunpack.c.l.b16 %v669
    %v709 = vunpack.c.l.b16 %v670
    %v710 = vunpack.c.l.b16 %v671
    %v711 = vunpack.c.l.b16 %v672
    %v712 = vunpack.c.l.b16 %v673
    %v713 = vunpack.c.l.b16 %v674
    %v714 = vunpack.c.l.b16 %v675
    %v715 = vunpack.c.l.b16 %v676
    %v716 = vunpack.c.l.b16 %v677
    %v717 = vpack.c.b16 %v702, %v701
    %v718 = vpack.c.b16 %v704, %v703
    %v719 = vpack.c.b16 %v706, %v705
    %v720 = vpack.c.b16 %v708, %v707
    %v721 = vpack.c.b16 %v710, %v709
    %v722 = vpack.c.b16 %v712, %v711
    %v723 = vpack.c.b16 %v714, %v713
    %v724 = vpack.c.b16 %v716, %v715
    %733 = vmatprep.subr.bf16.mxu0 0
    %734 = vmatpush1.bf16.msra.mxu0 %v717
    %735 = vmatprep.subr.bf16.mxu0 0
    %736 = vmatpush1.bf16.msra.mxu0 %v718
    %737 = vmatprep.subr.bf16.mxu0 0
    %738 = vmatpush1.bf16.msra.mxu0 %v719
    %739 = vmatprep.subr.bf16.mxu0 0
    %740 = vmatpush1.bf16.msra.mxu0 %v720
    %741 = vmatprep.subr.bf16.mxu0 0
    %742 = vmatpush1.bf16.msra.mxu0 %v721
    %743 = vmatprep.subr.bf16.mxu0 0
    %744 = vmatpush1.bf16.msra.mxu0 %v722
    %745 = vmatprep.subr.bf16.mxu0 0
    %746 = vmatpush1.bf16.msra.mxu0 %v723
    %747 = vmatprep.subr.bf16.mxu0 0
    %748 = vmatpush1.bf16.msra.mxu0 %v724
    %749 = vmatprep.subr.bf16.mxu0 0
    %750 = vmatpush1.bf16.msra.mxu0 0
    %751 = vmatprep.subr.bf16.mxu0 0
    %752 = vmatpush1.bf16.msra.mxu0 0
    %753 = vmatprep.subr.bf16.mxu0 0
    %754 = vmatpush1.bf16.msra.mxu0 0
    %755 = vmatprep.subr.bf16.mxu0 0
    %756 = vmatpush1.bf16.msra.mxu0 0
    %757 = vmatprep.subr.bf16.mxu0 0
    %758 = vmatpush1.bf16.msra.mxu0 0
    %759 = vmatprep.subr.bf16.mxu0 0
    %760 = vmatpush1.bf16.msra.mxu0 0
    %761 = vmatprep.subr.bf16.mxu0 0
    %762 = vmatpush1.bf16.msra.mxu0 0
    %763 = vmatprep.subr.bf16.mxu0 0
    %764 = vmatpush1.bf16.msra.mxu0 0
    %765 = vmatprep.mubr.bf16.mxu0 0
    %766 = vmatmul.mubr.bf16.gmra.mrb[0].mxu0 %v661
    %v767 = vpop.f32.mrb[0].mxu0
    %v768 = vadd.f32 %v683, %v767
    %v769 = vpop.f32.mrb[0].mxu0
    %v770 = vpop.f32.mrb[0].mxu0
    %v771 = vadd.f32 %v683, %v770
    %v772 = vpop.f32.mrb[0].mxu0
    %773 = vdwg.mxu0
    %v774 = vmax.f32 %v768, 0.0
    %v775 = vmax.f32 %v771, 0.0
    %v776 = vpack.c.bf16 %v775, %v774
    %v777 = vld [vmem:[#allocation6] sm:$0xf]
    %v778 = vld [vmem:[#allocation6 + $0x4] sm:$0xf]
    %v779 = vld [vmem:[#allocation6 + $0x8] sm:$0xf]
    %v780 = vld [vmem:[#allocation6 + $0xc] sm:$0xf]
    %v781 = vld [vmem:[#allocation6 + $0x10] sm:$0xf]
    %v782 = vld [vmem:[#allocation6 + $0x14] sm:$0xf]
    %v783 = vld [vmem:[#allocation6 + $0x18] sm:$0xf]
    %v784 = vld [vmem:[#allocation6 + $0x1c] sm:$0xf]
    %v785 = vld [vmem:[#allocation6 + $0x20] sm:$0xf]
    %v786 = vld [vmem:[#allocation6 + $0x24] sm:$0xf]
    %v787 = vld [vmem:[#allocation6 + $0x28] sm:$0xf]
    %v788 = vld [vmem:[#allocation6 + $0x2c] sm:$0xf]
    %v789 = vld [vmem:[#allocation6 + $0x30] sm:$0xf]
    %v790 = vld [vmem:[#allocation6 + $0x34] sm:$0xf]
    %v791 = vld [vmem:[#allocation6 + $0x38] sm:$0xf]
    %v792 = vld [vmem:[#allocation6 + $0x3c] sm:$0xf]
    %v793 = vld [vmem:[#allocation7] sm:$0x1]
    %v795 = vlaneseq
    %v796 = vshrl.u32 %v795, 7
    %v797 = vsub.s32 0, %v796
    %v798 = vrot.slane %v793, %v797
    %v816 = vunpack.c.l.b16 %v777
    %v817 = vunpack.c.l.b16 %v778
    %v818 = vunpack.c.l.b16 %v779
    %v819 = vunpack.c.l.b16 %v780
    %v820 = vunpack.c.l.b16 %v781
    %v821 = vunpack.c.l.b16 %v782
    %v822 = vunpack.c.l.b16 %v783
    %v823 = vunpack.c.l.b16 %v784
    %v824 = vunpack.c.l.b16 %v785
    %v825 = vunpack.c.l.b16 %v786
    %v826 = vunpack.c.l.b16 %v787
    %v827 = vunpack.c.l.b16 %v788
    %v828 = vunpack.c.l.b16 %v789
    %v829 = vunpack.c.l.b16 %v790
    %v830 = vunpack.c.l.b16 %v791
    %v831 = vunpack.c.l.b16 %v792
    %v832 = vpack.c.b16 %v817, %v816
    %v833 = vpack.c.b16 %v819, %v818
    %v834 = vpack.c.b16 %v821, %v820
    %v835 = vpack.c.b16 %v823, %v822
    %v836 = vpack.c.b16 %v825, %v824
    %v837 = vpack.c.b16 %v827, %v826
    %v838 = vpack.c.b16 %v829, %v828
    %v839 = vpack.c.b16 %v831, %v830
    %848 = vmatprep.subr.bf16.mxu0 0
    %849 = vmatpush1.bf16.msra.mxu0 %v832
    %850 = vmatprep.subr.bf16.mxu0 0
    %851 = vmatpush1.bf16.msra.mxu0 %v833
    %852 = vmatprep.subr.bf16.mxu0 0
    %853 = vmatpush1.bf16.msra.mxu0 %v834
    %854 = vmatprep.subr.bf16.mxu0 0
    %855 = vmatpush1.bf16.msra.mxu0 %v835
    %856 = vmatprep.subr.bf16.mxu0 0
    %857 = vmatpush1.bf16.msra.mxu0 %v836
    %858 = vmatprep.subr.bf16.mxu0 0
    %859 = vmatpush1.bf16.msra.mxu0 %v837
    %860 = vmatprep.subr.bf16.mxu0 0
    %861 = vmatpush1.bf16.msra.mxu0 %v838
    %862 = vmatprep.subr.bf16.mxu0 0
    %863 = vmatpush1.bf16.msra.mxu0 %v839
    %864 = vmatprep.subr.bf16.mxu0 0
    %865 = vmatpush1.bf16.msra.mxu0 0
    %866 = vmatprep.subr.bf16.mxu0 0
    %867 = vmatpush1.bf16.msra.mxu0 0
    %868 = vmatprep.subr.bf16.mxu0 0
    %869 = vmatpush1.bf16.msra.mxu0 0
    %870 = vmatprep.subr.bf16.mxu0 0
    %871 = vmatpush1.bf16.msra.mxu0 0
    %872 = vmatprep.subr.bf16.mxu0 0
    %873 = vmatpush1.bf16.msra.mxu0 0
    %874 = vmatprep.subr.bf16.mxu0 0
    %875 = vmatpush1.bf16.msra.mxu0 0
    %876 = vmatprep.subr.bf16.mxu0 0
    %877 = vmatpush1.bf16.msra.mxu0 0
    %878 = vmatprep.subr.bf16.mxu0 0
    %879 = vmatpush1.bf16.msra.mxu0 0
    %880 = vmatprep.mubr.bf16.mxu0 0
    %881 = vmatmul.mubr.bf16.gmra.mrb[0].mxu0 %v776
    %v882 = vpop.f32.mrb[0].mxu0
    %v883 = vadd.f32 %v798, %v882
    %v884 = vpop.f32.mrb[0].mxu0
    %v885 = vpop.f32.mrb[0].mxu0
    %v886 = vadd.f32 %v798, %v885
    %v887 = vpop.f32.mrb[0].mxu0
    %888 = vdwg.mxu0
    %v889 = vadd.f32 %v883, %v659
    %v890 = vadd.f32 %v886, %v660
    %v891 = vld [vmem:[#allocation12] sm:$0xff]
    %v892 = vld [vmem:[#allocation13] sm:$0xff]
    %893 = vadd.xlane.f32.xlu0 %v889
    %v894 = vpop.xlane.xlu0 %893
    %895 = vadd.xlane.f32.xlu0 %v890
    %v896 = vpop.xlane.xlu0 %895
    %v897 = vmul.f32 %v894, 0.03125
    %v898 = vmul.f32 %v896, 0.03125
    %v899 = vsub.f32 %v889, %v897
    %v900 = vsub.f32 %v890, %v898
    %v901 = vmul.f32 %v899, %v142
    %v902 = vmul.f32 %v900, %v142
    %v903 = vmul.f32 %v901, %v901
    %v904 = vmul.f32 %v902, %v902
    %905 = vadd.xlane.f32.xlu0 %v903
    %v906 = vpop.xlane.xlu0 %905
    %907 = vadd.xlane.f32.xlu0 %v904
    %v908 = vpop.xlane.xlu0 %907
    %v909 = vmul.f32 %v906, 0.032258064
    %v910 = vmul.f32 %v908, 0.032258064
    %v911 = vrsqrt.pop %v909
    %v912 = vmul.f32 %v909, %v911
    %vm913 = vcmp.eq.f32.partialorder %v909, inf
    %v914 = vsel %vm913, %v909, %v912
    %vm915 = vcmp.eq.f32.partialorder %v909, 0.0
    %v916 = vand.u32 %v909, 2147483648
    %v917 = vsel %vm915, %v916, %v914
    %v918 = vrsqrt.pop %v910
    %v919 = vmul.f32 %v910, %v918
    %vm920 = vcmp.eq.f32.partialorder %v910, inf
    %v921 = vsel %vm920, %v910, %v919
    %vm922 = vcmp.eq.f32.partialorder %v910, 0.0
    %v923 = vand.u32 %v910, 2147483648
    %v924 = vsel %vm922, %v923, %v921
    %v925 = vadd.f32 %v917, 1e-08
    %v926 = vadd.f32 %v924, 1e-08
    %v927 = vrcp.pop %v925
    %v928 = vrcp.pop %v926
    %v929 = vmul.f32 %v925, %v927
    %v930 = vmul.f32 %v926, %v928
    %v931 = vsub.f32 2.0, %v929
    %v932 = vsub.f32 2.0, %v930
    %v933 = vmul.f32 %v927, %v931
    %v934 = vmul.f32 %v928, %v932
    %v935 = vmul.f32 %v891, %v901
    %v936 = vmul.f32 %v891, %v902
    %v937 = vmul.f32 %v935, %v933
    %v938 = vmul.f32 %v936, %v934
    %v939 = vadd.f32 %v937, %v892
    %v940 = vadd.f32 %v938, %v892
    %941 = vst [vmem:[%s11] sm:$0xff] %v939
    %942 = vst [vmem:[%s11 + $0x8] sm:$0xff] %v940
    // Predicated region
    $region78: #{transformer_block.1} parent=1 // pred_check
      _
    $region79: #{transformer_block.1} parent=1 // pred_check_branch
      %944 = sbr.rel (0) target = $region81
    $region80: #{transformer_block.1} parent=1 // pred_region
      _
    $region81: #{transformer_block.1} parent=1 // pred_fallthru
      _
    // Predicated region
    $region82: #{transformer_block.1} parent=1 // pred_check
      _
    $region83: #{transformer_block.1} parent=1 // pred_check_branch
      %946 = sbr.rel (0) target = $region85
    $region84: #{transformer_block.1} parent=1 // pred_region
      _
    $region85: #{transformer_block.1} parent=1 // pred_fallthru
      _
    %947 = vsyncpa [#allocation3], 1
    %948 = vsyncpa [#allocation5], 1
    %949 = vsyncpa [#allocation8], 1
    %950 = vsyncpa [#allocation11], 1
    %951 = vsyncpa [#allocation14], 1

</llo_original>
